<compile_context>
chip_gen: v5e
topology: v5e:2x2
jax: 0.10.0
libtpu: 0.0.40
codegen_flags: <defaults>
</compile_context>

<pallas_src>
import jax
import jax.numpy as jnp
from jax.experimental import pallas as pl
from jax.experimental.pallas import tpu as pltpu

BETA = 0.11
_HALF_BETA = 0.5 * BETA
_HALF_OVER_BETA = 0.5 / BETA
_LANES = 128


def _smooth_l1_kernel(pred_ref, target_ref, out_ref):
    x = jnp.abs(pred_ref[...] - target_ref[...])
    l1 = x - _HALF_BETA
    l2 = (_HALF_OVER_BETA * x) * x          # 0.5 * x^2 / beta, divide folded
    out_ref[...] = jnp.where(x >= BETA, l1, l2)


def smooth_l1_loss(pred, target, *, block_rows=4096):
    """Elementwise smooth-L1 (beta=0.11), matching the PyTorch module."""
    assert pred.shape == target.shape, "pred/target shape mismatch"
    assert pred.dtype == target.dtype, "pred/target dtype mismatch"
    orig_shape = pred.shape
    n = pred.size
    dtype = pred.dtype

    # dtype-aware sublane granularity: 8 for f32, 16 for bf16, 32 for 8-bit.
    itemsize = jnp.dtype(dtype).itemsize
    sublane = max(8, 32 // itemsize)

    # Flatten to a lane-dense (rows, 128) slab; only pad when required.
    rows = pl.cdiv(n, _LANES)
    rows_padded = ((rows + sublane - 1) // sublane) * sublane
    pad = rows_padded * _LANES - n

    if pad == 0:
        pred_f = pred.reshape(rows_padded, _LANES)
        target_f = target.reshape(rows_padded, _LANES)
    else:
        pred_f = jnp.pad(pred.reshape(-1), (0, pad)).reshape(rows_padded, _LANES)
        target_f = jnp.pad(target.reshape(-1), (0, pad)).reshape(rows_padded, _LANES)

    # Tile: ~2 MiB (f32) per input block, multiple of the sublane granularity,
    # never larger than the (padded) array.  Non-divisible row counts are
    # handled by a masked tail block (grid = cdiv), NOT a whole-array tile.
    tile_rows = min(block_rows, rows_padded)
    tile_rows = max(sublane, (tile_rows // sublane) * sublane)
    grid = (pl.cdiv(rows_padded, tile_rows),)

    out = pl.pallas_call(
        _smooth_l1_kernel,
        out_shape=jax.ShapeDtypeStruct((rows_padded, _LANES), dtype),
        grid_spec=pltpu.PrefetchScalarGridSpec(
            num_scalar_prefetch=0,
            grid=grid,
            in_specs=[
                pl.BlockSpec((tile_rows, _LANES), lambda i: (i, 0)),
                pl.BlockSpec((tile_rows, _LANES), lambda i: (i, 0)),
            ],
            out_specs=pl.BlockSpec((tile_rows, _LANES), lambda i: (i, 0)),
        ),
        compiler_params=pltpu.CompilerParams(
            dimension_semantics=("parallel",),
        ),
    )(pred_f, target_f)

    if pad == 0:
        return out.reshape(orig_shape)
    return out.reshape(-1)[:n].reshape(orig_shape)


def smooth_l1_loss_ref(pred, target, beta=BETA):
    x = jnp.abs(pred - target)
    l1 = x - 0.5 * beta
    l2 = 0.5 * x ** 2 / beta
    return jnp.where(x >= beta, l1, l2)


if __name__ == "__main__":
    key = jax.random.PRNGKey(0)
    k1, k2 = jax.random.split(key)
    # NCHW inputs consistent with a detection-head regression output.
    shape = (2, 4, 16, 16)
    pred = jax.random.normal(k1, shape, dtype=jnp.float32)
    target = jax.random.normal(k2, shape, dtype=jnp.float32)

    out = smooth_l1_loss(pred, target)
    out = jax.block_until_ready(out)

    ref = smooth_l1_loss_ref(pred, target)
    assert out.shape == shape
    assert jnp.allclose(out, ref, atol=1e-6, rtol=1e-6), "mismatch vs reference"
    print("KERNEL_OK")
</pallas_src>

<mosaic_0001>
module attributes {stable_mosaic.version = 11 : i64} {
  func.func @_smooth_l1_kernel(%arg0: i32, %arg1: memref<16x128xf32, #tpu.memory_space<vmem>>, %arg2: memref<16x128xf32, #tpu.memory_space<vmem>>, %arg3: memref<16x128xf32, #tpu.memory_space<vmem>>) attributes {dimension_semantics = [#tpu.dimension_semantics<parallel>], iteration_bounds = array<i64: 1>, scalar_prefetch = 0 : i64, scratch_operands = 0 : i64, tpu.core_type = #tpu.core_type<tc>, window_params = [{transform_indices = @transform_0, window_bounds = array<i64: 16, 128>}, {transform_indices = @transform_1, window_bounds = array<i64: 16, 128>}, {transform_indices = @transform_2, window_bounds = array<i64: 16, 128>}]} {
    %c0 = arith.constant 0 : index
    %c0_0 = arith.constant 0 : index
    %0 = vector.load %arg1[%c0, %c0_0] : memref<16x128xf32, #tpu.memory_space<vmem>>, vector<16x128xf32>
    %c0_1 = arith.constant 0 : index
    %c0_2 = arith.constant 0 : index
    %1 = vector.load %arg2[%c0_1, %c0_2] : memref<16x128xf32, #tpu.memory_space<vmem>>, vector<16x128xf32>
    %2 = arith.subf %0, %1 : vector<16x128xf32>
    %3 = math.absf %2 : vector<16x128xf32>
    %cst = arith.constant 5.500000e-02 : f32
    %4 = vector.broadcast %cst : f32 to vector<16x128xf32>
    %5 = arith.subf %3, %4 : vector<16x128xf32>
    %cst_3 = arith.constant 4.5454545 : f32
    %6 = vector.broadcast %cst_3 : f32 to vector<16x128xf32>
    %7 = arith.mulf %6, %3 : vector<16x128xf32>
    %8 = arith.mulf %7, %3 : vector<16x128xf32>
    %cst_4 = arith.constant 1.100000e-01 : f32
    %9 = vector.broadcast %cst_4 : f32 to vector<16x128xf32>
    %10 = arith.cmpf oge, %3, %9 : vector<16x128xf32>
    %11 = arith.select %10, %5, %8 : vector<16x128xi1>, vector<16x128xf32>
    %c0_5 = arith.constant 0 : index
    %c0_6 = arith.constant 0 : index
    %12 = vector.load %arg3[%c0_5, %c0_6] : memref<16x128xf32, #tpu.memory_space<vmem>>, vector<16x128xf32>
    tpu.vector_store %arg3[%c0_5, %c0_6], %11 {strides = array<i32>} : memref<16x128xf32, #tpu.memory_space<vmem>>, vector<16x128xf32>,
    return
  }
  func.func @transform_0(%arg0: i32) -> (i32, i32) {
    %c0_i32 = arith.constant 0 : i32
    %c0_i32_0 = arith.constant 0 : i32
    return %arg0, %c0_i32 : i32, i32
  }
  func.func @transform_1(%arg0: i32) -> (i32, i32) {
    %c0_i32 = arith.constant 0 : i32
    %c0_i32_0 = arith.constant 0 : i32
    return %arg0, %c0_i32 : i32, i32
  }
  func.func @transform_2(%arg0: i32) -> (i32, i32) {
    %c0_i32 = arith.constant 0 : i32
    %c0_i32_0 = arith.constant 0 : i32
    return %arg0, %c0_i32 : i32, i32
  }
}

</mosaic_0001>

<llo_original>
// kernel: tpu_custom_call.1
$region0: #{tpu_custom_call.1}
  #allocation0 [shape = 'u32[]', space=smem, size = 0x4, offset = 0x4, fixed_abs, tag = 'smem constant byte address 0x4 - core index']
  #allocation1 [shape = 'u32[72,128]{1,0:T(1,128)}', space=vmem, size = 0x9000, scoped, tag = 'internal scratch']
  %s0 = inlined_call_operand.hbm [shape: f32[16,128], index: 0, kind: input, shape index: {}]
  %s1 = inlined_call_operand.hbm [shape: f32[16,128], index: 1, kind: input, shape index: {}]
  %s2 = inlined_call_operand.hbm [shape: f32[16,128], index: 2, kind: output, shape index: {}]
  %s3 = sld [smem:[#allocation0]]
  $region26: #{tpu_custom_call.1} parent=0
    _
  %s5 = ssub.s32 1, %s3
  %s6 = scalar_select 0, %s5, %s3
  $region1: #{tpu_custom_call.1} parent=0
    #allocation2 [shape = 'u8[8192]{0}', space=vmem, size = 0x2000, scoped, tag = 'input window, operand 0, single buffered']
    #allocation3 [shape = 's32[1]{0}', space=sflag, size = 0x4, scoped, tag = 'scoped memory for tpu_custom_call.1']
    #allocation4 [shape = 's32[1]{0}', space=sflag, size = 0x4, scoped, tag = 'scoped memory for tpu_custom_call.1']
    #allocation5 [shape = 'u8[8192]{0}', space=vmem, size = 0x2000, scoped, tag = 'input window, operand 1, single buffered']
    #allocation6 [shape = 's32[1]{0}', space=sflag, size = 0x4, scoped, tag = 'scoped memory for tpu_custom_call.1']
    #allocation7 [shape = 'u8[8192]{0}', space=vmem, size = 0x2000, scoped, tag = 'output window, operand 0, single buffered']
    %7 = vsyncpa [#allocation3], 0
    %8 = vsyncpa [#allocation6], 0
    %9 = vsyncpa [#allocation4], 0
    // Predicated region
    $region2: #{tpu_custom_call.1} parent=1 // pred_check
      _
    $region3: #{tpu_custom_call.1} parent=1 // pred_check_branch
      %11 = sbr.rel (0) target = $region5
    $region4: #{tpu_custom_call.1} parent=1 // pred_region
      %13 = vsyncadd [#allocation3], 0
      %s14 = sshll.u32 %s0, 4
      %s15 = int_to_ptr.hbm [resolvable:$true] %s14
      %s16 = sshll.u32 [#allocation2], 4
      %s17 = int_to_ptr.vmem [resolvable:$true] %s16
      %22 = dma.hbm_to_vmem [thread:$0]  %s15, 256, %s17, [#allocation3], 128, 128, 8
    $region5: #{tpu_custom_call.1} parent=1 // pred_fallthru
      _
    // Predicated region
    $region6: #{tpu_custom_call.1} parent=1 // pred_check
      _
    $region7: #{tpu_custom_call.1} parent=1 // pred_check_branch
      %24 = sbr.rel (0) target = $region9
    $region8: #{tpu_custom_call.1} parent=1 // pred_region
      %26 = vsyncadd [#allocation6], 0
      %s27 = sshll.u32 %s1, 4
      %s28 = int_to_ptr.hbm [resolvable:$true] %s27
      %s29 = sshll.u32 [#allocation5], 4
      %s30 = int_to_ptr.vmem [resolvable:$true] %s29
      %35 = dma.hbm_to_vmem [thread:$0]  %s28, 256, %s30, [#allocation6], 128, 128, 8
    $region9: #{tpu_custom_call.1} parent=1 // pred_fallthru
      _
    // Predicated region
    $region10: #{tpu_custom_call.1} parent=1 // pred_check
      _
    $region11: #{tpu_custom_call.1} parent=1 // pred_check_branch
      %37 = sbr.rel (0) target = $region13
    $region12: #{tpu_custom_call.1} parent=1 // pred_region
      %39 = dma.done [#allocation3], 256
    $region13: #{tpu_custom_call.1} parent=1 // pred_fallthru
      _
    // Predicated region
    $region14: #{tpu_custom_call.1} parent=1 // pred_check
      _
    $region15: #{tpu_custom_call.1} parent=1 // pred_check_branch
      %41 = sbr.rel (0) target = $region17
    $region16: #{tpu_custom_call.1} parent=1 // pred_region
      %43 = dma.done [#allocation6], 256
    $region17: #{tpu_custom_call.1} parent=1 // pred_fallthru
      _
    %v44 = vld [vmem:[#allocation2] sm:$0xff]
    %v45 = vld [vmem:[#allocation2 + $0x8] sm:$0xff]
    %v46 = vld [vmem:[#allocation5] sm:$0xff]
    %v47 = vld [vmem:[#allocation5 + $0x8] sm:$0xff]
    %v48 = vsub.f32 %v44, %v46
    %v49 = vsub.f32 %v45, %v47
    %v50 = vand.u32 2147483647, %v48
    %v51 = vand.u32 2147483647, %v49
    %v52 = vsub.f32 %v50, 0.055
    %v53 = vsub.f32 %v51, 0.055
    %v54 = vmul.f32 %v50, 4.5454545
    %v55 = vmul.f32 %v51, 4.5454545
    %v56 = vmul.f32 %v54, %v50
    %v57 = vmul.f32 %v55, %v51
    %vm58 = vcmp.ge.f32.partialorder %v50, 0.11
    %vm59 = vcmp.ge.f32.partialorder %v51, 0.11
    %v60 = vsel %vm58, %v52, %v56
    %v61 = vsel %vm59, %v53, %v57
    %62 = vst [vmem:[#allocation7] sm:$0xff] %v60
    %63 = vst [vmem:[#allocation7 + $0x8] sm:$0xff] %v61
    // Predicated region
    $region18: #{tpu_custom_call.1} parent=1 // pred_check
      _
    $region19: #{tpu_custom_call.1} parent=1 // pred_check_branch
      %65 = sbr.rel (0) target = $region21
    $region20: #{tpu_custom_call.1} parent=1 // pred_region
      %67 = vsyncadd [#allocation4], 0
      %s68 = sshll.u32 [#allocation7], 4
      %s69 = int_to_ptr.vmem [resolvable:$true] %s68
      %s70 = sshll.u32 %s2, 4
      %s71 = int_to_ptr.hbm [resolvable:$true] %s70
      %76 = dma.vmem_to_hbm [thread:$0]  %s69, 256, %s71, [#allocation4], 128, 128, 8
    $region21: #{tpu_custom_call.1} parent=1 // pred_fallthru
      _
    // Predicated region
    $region22: #{tpu_custom_call.1} parent=1 // pred_check
      _
    $region23: #{tpu_custom_call.1} parent=1 // pred_check_branch
      %78 = sbr.rel (0) target = $region25
    $region24: #{tpu_custom_call.1} parent=1 // pred_region
      %80 = dma.done [#allocation4], 256
    $region25: #{tpu_custom_call.1} parent=1 // pred_fallthru
      _
    %81 = vsyncpa [#allocation3], 1
    %82 = vsyncpa [#allocation6], 1
    %83 = vsyncpa [#allocation4], 1

</llo_original>
